<compile_context>
chip_gen: v7x
topology: tpu7x:2x2x1
jax: 0.10.0
libtpu: 0.0.40
codegen_flags: <defaults>
</compile_context>

<pallas_src>
import functools

import jax
import jax.numpy as jnp
from jax.experimental import pallas as pl
from jax.experimental.pallas import tpu as pltpu

BN_EPS = 1e-5
LANES = 128


def _round_up(x, m):
    return ((x + m - 1) // m) * m


def _vmem_capacity_bytes():
    # Generation-aware VMEM sizing (v5e/v6e: 128 MiB, v7x: 64 MiB per TensorCore).
    try:
        return int(pltpu.get_tpu_info().vmem_capacity_bytes)
    except Exception:
        return 64 * 2 ** 20  # conservative fallback (v7x per-core capacity)


def gate_block_kernel(x_ref, w_ref, gb_ref, o_ref, sum_ref, sq_ref, *zc_refs,
                      batch, n_branches, cache_z, approx_recip):
    """Fused Linear -> BatchNorm1d(train) -> Sigmoid -> softmax(dim=1).

    grid = (pass, batch_tile):
      pass 0: stream x row-tiles, d = x @ W (bias-free, see wrapper), accumulate
              sum(d) / sum(d*d) into VMEM scratch (GLOBAL full-batch BN statistics),
              optionally stash d in the VMEM z-cache.
      pass 1: fold mean/var/gamma/beta into one scale/shift FMA per element, sigmoid
              (EUP tanh), masked softmax over the lane-padded branch dim, lane-dense
              unmasked store.
    """
    p = pl.program_id(0)  # 0 = stats pass, 1 = normalize pass
    j = pl.program_id(1)  # batch row-tile index

    @pl.when(p == 0)
    def _stats_pass():
        @pl.when(j == 0)
        def _init():
            sum_ref[...] = jnp.zeros_like(sum_ref)
            sq_ref[...] = jnp.zeros_like(sq_ref)

        # Linear without bias: the bias is exactly cancelled by BN's mean subtraction,
        # and omitting it reduces |mean| in the single-pass variance (less cancellation).
        # MXU operands stay in their input dtype (bf16 fast path on v5e/v6e/v7x) with
        # f32 accumulation via preferred_element_type.
        d = jnp.dot(x_ref[...], w_ref[...], preferred_element_type=jnp.float32)
        if cache_z:
            zc_refs[0][j] = d
        # Rows padded past the real batch are exact zeros (zero-padded x, bias-free
        # matmul), so they contribute nothing to the sums: no row masking needed.
        sum_ref[...] += jnp.sum(d, axis=0, keepdims=True)
        sq_ref[...] += jnp.sum(d * d, axis=0, keepdims=True)

    @pl.when(p == 1)
    def _normalize_pass():
        @pl.when(j == 0)
        def _finalize_stats():
            inv_n = 1.0 / batch
            mean = sum_ref[...] * inv_n
            # Biased (training-mode) variance; clamp guards fp cancellation.
            var = jnp.maximum(sq_ref[...] * inv_n - mean * mean, 0.0)
            scale = gb_ref[0:1, :] * jax.lax.rsqrt(var + BN_EPS)   # gamma row
            # Reuse scratch rows as (scale, shift): BN collapses to one FMA / element.
            sum_ref[...] = scale
            sq_ref[...] = gb_ref[1:2, :] - mean * scale            # beta row

        if cache_z:
            d = zc_refs[0][j]   # no second HBM read of x, no second matmul
        else:
            d = jnp.dot(x_ref[...], w_ref[...], preferred_element_type=jnp.float32)

        zn = d * sum_ref[...] + sq_ref[...]
        # Sigmoid as a single EUP transcendental.
        s = 0.5 * (jnp.tanh(0.5 * zn) + 1.0)
        # Softmax over the branch dim.  s is a sigmoid output in (0,1) so exp cannot
        # overflow and the usual max-subtraction is dropped.  Padded lanes
        # (>= n_branches) are excluded from the denominator.
        col = jax.lax.broadcasted_iota(jnp.int32, (1, s.shape[1]), 1)
        e = jnp.where(col < n_branches, jnp.exp(s), 0.0)
        denom = jnp.sum(e, axis=1, keepdims=True)
        o_ref[...] = (e * pl.reciprocal(denom, approx=approx_recip)).astype(o_ref.dtype)


def gate_block(x, w, b, gamma, beta, *, tile_b=None, compute_dtype=None,
               out_dtype=jnp.float32, approx_recip=True, return_padded=False):
    """Fused GateBlock forward (training-mode BatchNorm batch statistics).

    x: (B, inplanes); w: (n_branches, inplanes) [nn.Linear layout]; b: (n_branches,)
    gamma/beta: (n_branches,) BatchNorm1d affine params.
    Returns softmax(sigmoid(BN(x @ w.T + b)), axis=1), shape (B, n_branches).

    The Linear bias `b` is mathematically cancelled by the training-mode BN mean
    subtraction (BN(z + c) == BN(z) for a per-column constant c), so it is accepted
    for API fidelity but dropped from the fused computation.
    """
    del b  # exactly cancelled by BatchNorm's mean subtraction (see docstring)

    B, K = x.shape
    n_branches, K2 = w.shape
    assert K == K2, "weight inner dim must match inplanes"

    cdt = jnp.dtype(compute_dtype if compute_dtype is not None else x.dtype)
    elem = cdt.itemsize
    out_elem = jnp.dtype(out_dtype).itemsize
    sub = {4: 8, 2: 16, 1: 32}.get(elem, 8)     # sublane packing multiple for row tiles

    n_pad = _round_up(n_branches, LANES)        # lane-dense output width

    vmem_cap = _vmem_capacity_bytes()
    budget = int(0.60 * vmem_cap)               # headroom for compiler-internal scratch

    # VMEM accounting (BlockSpec double-buffers every input/output block).
    fixed_bytes = (2 * _round_up(K, sub) * n_pad * elem   # W (double-buffered)
                   + 2 * 8 * n_pad * 4                    # packed gamma/beta (8-sublane pad)
                   + 2 * 8 * n_pad * 4)                   # sum / sumsq scratch rows
    per_row_bytes = 2 * K * elem + 2 * n_pad * out_elem   # x tile + out tile, per row

    if tile_b is None:
        # Large tiles amortize the ~0.35us/grid-step pipeline overhead; cap per-tile
        # x bytes so double-buffering fits the per-generation budget.
        tile_b = 1024 if K * elem <= (8 << 10) else max(sub, (4 << 20) // (K * elem))
    tile_b = min(int(tile_b), _round_up(B, sub))
    while tile_b > sub and fixed_bytes + tile_b * per_row_bytes > budget:
        tile_b //= 2
    tile_b = max(sub, _round_up(tile_b, sub))

    b_pad = _round_up(B, tile_b)
    num_tiles = b_pad // tile_b

    # Keep d = x @ W resident in a VMEM cache across the two passes when it fits:
    # pass 1 then skips the second HBM read of x and the second matmul.
    zcache_bytes = num_tiles * tile_b * n_pad * 4
    cache_z = fixed_bytes + tile_b * per_row_bytes + zcache_bytes <= budget

    needed = fixed_bytes + tile_b * per_row_bytes + (zcache_bytes if cache_z else 0)
    vmem_limit = int(min(0.75 * vmem_cap, max(32 << 20, 1.3 * needed)))

    # Pad/cast inputs.  Padded rows/lanes are exact zeros, so they vanish from the BN
    # sums, get masked out of the softmax denominator, and are sliced off below.
    x_p = x.astype(cdt)
    if b_pad != B:
        x_p = jnp.pad(x_p, ((0, b_pad - B), (0, 0)))
    w_t = jnp.zeros((K, n_pad), cdt).at[:, :n_branches].set(w.T.astype(cdt))
    gb = jnp.zeros((2, n_pad), jnp.float32)
    gb = gb.at[0, :n_branches].set(gamma.astype(jnp.float32))
    gb = gb.at[1, :n_branches].set(beta.astype(jnp.float32))

    kernel = functools.partial(gate_block_kernel, batch=B, n_branches=n_branches,
                               cache_z=cache_z, approx_recip=approx_recip)

    if cache_z:
        # Pass 1 never reads x: pin its block to the last pass-0 tile so no extra x
        # DMAs are issued after the pass-0 -> pass-1 transition.
        x_map = lambda p, j, _last=num_tiles - 1: (j * (1 - p) + p * _last, 0)
    else:
        x_map = lambda p, j: (j, 0)

    scratch = [pltpu.VMEM((1, n_pad), jnp.float32),   # sum(d)   -> later BN scale
               pltpu.VMEM((1, n_pad), jnp.float32)]   # sum(d^2) -> later BN shift
    if cache_z:
        scratch.append(pltpu.VMEM((num_tiles, tile_b, n_pad), jnp.float32))  # z cache

    out = pl.pallas_call(
        kernel,
        out_shape=jax.ShapeDtypeStruct((b_pad, n_pad), out_dtype),
        grid_spec=pltpu.PrefetchScalarGridSpec(
            num_scalar_prefetch=0,
            grid=(2, num_tiles),   # (pass, batch tile): 0 = stats, 1 = normalize
            in_specs=[
                pl.BlockSpec((tile_b, K), x_map),               # x row tile
                pl.BlockSpec((K, n_pad), lambda p, j: (0, 0)),  # W (transposed, lane-padded)
                pl.BlockSpec((2, n_pad), lambda p, j: (0, 0)),  # packed [gamma; beta]
            ],
            # Pass 0 maps every iteration to output block 0 and never writes it; the
            # block index never changes during pass 0 so no garbage writebacks occur.
            # Lane-dense (tile_b, 128k) unmasked stores happen only in pass 1.
            out_specs=pl.BlockSpec((tile_b, n_pad), lambda p, j: (j * p, 0)),
            scratch_shapes=scratch,
        ),
        compiler_params=pltpu.CompilerParams(
            # Both axes sequential: the pass axis orders stats before normalize and the
            # batch-tile axis is coupled through the global-BN scratch accumulators.
            dimension_semantics=("arbitrary", "arbitrary"),
            vmem_limit_bytes=vmem_limit,
        ),
    )(x_p, w_t, gb)

    if return_padded:
        return out   # (b_pad, n_pad) lane-dense buffer for a fused downstream consumer
    return out[:B, :n_branches]


def gate_block_ref(x, w, b, gamma, beta):
    """Pure-JAX reference with PyTorch GateBlock (training-mode BN) semantics."""
    z = x @ w.T + b[None, :]
    mean = jnp.mean(z, axis=0, keepdims=True)
    var = jnp.mean((z - mean) ** 2, axis=0, keepdims=True)
    zn = (z - mean) / jnp.sqrt(var + BN_EPS) * gamma[None, :] + beta[None, :]
    s = jax.nn.sigmoid(zn)
    return jax.nn.softmax(s, axis=1)


if __name__ == "__main__":
    # --- small config consistent with the module: B=8, inplanes=32, n_branches=4 ---
    B, inplanes, n_branches = 8, 32, 4
    key = jax.random.PRNGKey(0)
    kx, kw, kb = jax.random.split(key, 3)

    x = jax.random.normal(kx, (B, inplanes), dtype=jnp.float32)
    bound = 1.0 / (inplanes ** 0.5)
    w = jax.random.uniform(kw, (n_branches, inplanes), jnp.float32, -bound, bound)
    b = jax.random.uniform(kb, (n_branches,), jnp.float32, -bound, bound)
    gamma = jnp.ones((n_branches,), jnp.float32)   # BatchNorm1d default init
    beta = jnp.zeros((n_branches,), jnp.float32)

    out = jax.block_until_ready(gate_block(x, w, b, gamma, beta, approx_recip=False))
    ref = gate_block_ref(x, w, b, gamma, beta)
    assert out.shape == (B, n_branches)
    assert jnp.allclose(out, ref, atol=1e-5, rtol=1e-4), float(jnp.max(jnp.abs(out - ref)))
    assert jnp.allclose(jnp.sum(out, axis=1), jnp.ones((B,)), atol=1e-5)

    # --- batch-tiled grid (B not a multiple of the tile), under jit (hoists param prep) ---
    B2, n2 = 200, 6
    kx2, kw2, kb2 = jax.random.split(jax.random.PRNGKey(1), 3)
    x2 = jax.random.normal(kx2, (B2, inplanes), dtype=jnp.float32)
    w2 = jax.random.uniform(kw2, (n2, inplanes), jnp.float32, -bound, bound)
    b2 = jax.random.uniform(kb2, (n2,), jnp.float32, -bound, bound)
    gamma2 = jnp.linspace(0.5, 1.5, n2, dtype=jnp.float32)
    beta2 = jnp.linspace(-0.2, 0.2, n2, dtype=jnp.float32)

    gate2 = jax.jit(functools.partial(gate_block, tile_b=64, approx_recip=False))
    out2 = jax.block_until_ready(gate2(x2, w2, b2, gamma2, beta2))
    ref2 = gate_block_ref(x2, w2, b2, gamma2, beta2)
    assert out2.shape == (B2, n2)
    assert jnp.allclose(out2, ref2, atol=1e-5, rtol=1e-4), float(jnp.max(jnp.abs(out2 - ref2)))
    assert jnp.allclose(jnp.sum(out2, axis=1), jnp.ones((B2,)), atol=1e-5)

    # --- fast path: bf16 x/W on the MXU + EUP approx-reciprocal softmax divide ---
    out3 = jax.block_until_ready(
        gate_block(x2, w2, b2, gamma2, beta2, tile_b=64, compute_dtype=jnp.bfloat16))
    assert out3.shape == (B2, n2)
    assert jnp.allclose(out3, ref2, atol=3e-2), float(jnp.max(jnp.abs(out3 - ref2)))
    assert jnp.allclose(jnp.sum(out3, axis=1), jnp.ones((B2,)), atol=5e-3)

    print("KERNEL_OK")
</pallas_src>

<mosaic_0001>
module attributes {stable_mosaic.version = 11 : i64} {
  func.func @gate_block_kernel(%arg0: i32, %arg1: i32, %arg2: memref<8x32xf32, #tpu.memory_space<vmem>>, %arg3: memref<32x128xf32, #tpu.memory_space<vmem>>, %arg4: memref<2x128xf32, #tpu.memory_space<vmem>>, %arg5: memref<8x128xf32, #tpu.memory_space<vmem>>, %arg6: memref<1x128xf32, #tpu.memory_space<vmem>>, %arg7: memref<1x128xf32, #tpu.memory_space<vmem>>, %arg8: memref<1x8x128xf32, #tpu.memory_space<vmem>>) attributes {dimension_semantics = [#tpu.dimension_semantics<arbitrary>, #tpu.dimension_semantics<arbitrary>], iteration_bounds = array<i64: 2, 1>, scalar_prefetch = 0 : i64, scratch_operands = 3 : i64, tpu.core_type = #tpu.core_type<tc>, window_params = [{transform_indices = @transform_0, window_bounds = array<i64: 8, 32>}, {pipeline_mode = #tpu.pipeline_mode<synchronous>, transform_indices = @transform_1, window_bounds = array<i64: 32, 128>}, {pipeline_mode = #tpu.pipeline_mode<synchronous>, transform_indices = @transform_2, window_bounds = array<i64: 2, 128>}, {transform_indices = @transform_3, window_bounds = array<i64: 8, 128>}]} {
    %c0_i32 = arith.constant 0 : i32
    %0 = arith.cmpi eq, %arg0, %c0_i32 : i32
    %1 = arith.extui %0 : i1 to i32
    %c0_i32_0 = arith.constant 0 : i32
    %2 = arith.cmpi ne, %1, %c0_i32_0 : i32
    scf.if %2 {
      %c0_i32_2 = arith.constant 0 : i32
      %6 = arith.cmpi eq, %arg1, %c0_i32_2 : i32
      %7 = arith.extui %6 : i1 to i32
      %c0_i32_3 = arith.constant 0 : i32
      %8 = arith.cmpi ne, %7, %c0_i32_3 : i32
      scf.if %8 {
        %cst_19 = arith.constant 0.000000e+00 : f32
        %27 = vector.broadcast %cst_19 : f32 to vector<1x128xf32>
        %c0_20 = arith.constant 0 : index
        %c0_21 = arith.constant 0 : index
        %28 = vector.load %arg6[%c0_20, %c0_21] : memref<1x128xf32, #tpu.memory_space<vmem>>, vector<1x128xf32>
        tpu.vector_store %arg6[%c0_20, %c0_21], %27 {strides = array<i32>} : memref<1x128xf32, #tpu.memory_space<vmem>>, vector<1x128xf32>,
        %cst_22 = arith.constant 0.000000e+00 : f32
        %29 = vector.broadcast %cst_22 : f32 to vector<1x128xf32>
        %c0_23 = arith.constant 0 : index
        %c0_24 = arith.constant 0 : index
        %30 = vector.load %arg7[%c0_23, %c0_24] : memref<1x128xf32, #tpu.memory_space<vmem>>, vector<1x128xf32>
        tpu.vector_store %arg7[%c0_23, %c0_24], %29 {strides = array<i32>} : memref<1x128xf32, #tpu.memory_space<vmem>>, vector<1x128xf32>,
      } else {
      }
      %c0 = arith.constant 0 : index
      %c0_4 = arith.constant 0 : index
      %9 = vector.load %arg2[%c0, %c0_4] : memref<8x32xf32, #tpu.memory_space<vmem>>, vector<8x32xf32>
      %c0_5 = arith.constant 0 : index
      %c0_6 = arith.constant 0 : index
      %10 = vector.load %arg3[%c0_5, %c0_6] : memref<32x128xf32, #tpu.memory_space<vmem>>, vector<32x128xf32>
      %cst = arith.constant dense<0.000000e+00> : vector<8x128xf32>
      %11 = tpu.matmul %9, %10, %cst {dimension_numbers = #tpu.dot_dimension_numbers<[1], [0], [0], [1], [0, 0, 1, 1], [], []>} : vector<8x32xf32>, vector<32x128xf32>, vector<8x128xf32> -> vector<8x128xf32>
      %12 = arith.index_cast %arg1 : i32 to index
      %c0_7 = arith.constant 0 : index
      %c0_8 = arith.constant 0 : index
      %13 = vector.load %arg8[%12, %c0_7, %c0_8] : memref<1x8x128xf32, #tpu.memory_space<vmem>>, vector<1x8x128xf32>
      %14 = vector.shape_cast %13 : vector<1x8x128xf32> to vector<8x128xf32>
      %15 = vector.shape_cast %11 : vector<8x128xf32> to vector<1x8x128xf32>
      tpu.vector_store %arg8[%12, %c0_7, %c0_8], %15 {strides = array<i32>} : memref<1x8x128xf32, #tpu.memory_space<vmem>>, vector<1x8x128xf32>,
      %c0_9 = arith.constant 0 : index
      %c0_10 = arith.constant 0 : index
      %16 = vector.load %arg6[%c0_9, %c0_10] : memref<1x128xf32, #tpu.memory_space<vmem>>, vector<1x128xf32>
      %cst_11 = arith.constant dense<0.000000e+00> : vector<128xf32>
      %17 = vector.multi_reduction <add>, %11, %cst_11 [0] : vector<8x128xf32> to vector<128xf32>
      %18 = vector.shape_cast %17 : vector<128xf32> to vector<1x128xf32>
      %19 = arith.addf %16, %18 : vector<1x128xf32>
      %c0_12 = arith.constant 0 : index
      %c0_13 = arith.constant 0 : index
      %20 = vector.load %arg6[%c0_12, %c0_13] : memref<1x128xf32, #tpu.memory_space<vmem>>, vector<1x128xf32>
      tpu.vector_store %arg6[%c0_12, %c0_13], %19 {strides = array<i32>} : memref<1x128xf32, #tpu.memory_space<vmem>>, vector<1x128xf32>,
      %c0_14 = arith.constant 0 : index
      %c0_15 = arith.constant 0 : index
      %21 = vector.load %arg7[%c0_14, %c0_15] : memref<1x128xf32, #tpu.memory_space<vmem>>, vector<1x128xf32>
      %22 = arith.mulf %11, %11 : vector<8x128xf32>
      %cst_16 = arith.constant dense<0.000000e+00> : vector<128xf32>
      %23 = vector.multi_reduction <add>, %22, %cst_16 [0] : vector<8x128xf32> to vector<128xf32>
      %24 = vector.shape_cast %23 : vector<128xf32> to vector<1x128xf32>
      %25 = arith.addf %21, %24 : vector<1x128xf32>
      %c0_17 = arith.constant 0 : index
      %c0_18 = arith.constant 0 : index
      %26 = vector.load %arg7[%c0_17, %c0_18] : memref<1x128xf32, #tpu.memory_space<vmem>>, vector<1x128xf32>
      tpu.vector_store %arg7[%c0_17, %c0_18], %25 {strides = array<i32>} : memref<1x128xf32, #tpu.memory_space<vmem>>, vector<1x128xf32>,
    } else {
    }
    %c1_i32 = arith.constant 1 : i32
    %3 = arith.cmpi eq, %arg0, %c1_i32 : i32
    %4 = arith.extui %3 : i1 to i32
    %c0_i32_1 = arith.constant 0 : i32
    %5 = arith.cmpi ne, %4, %c0_i32_1 : i32
    scf.if %5 {
      %c0_i32_2 = arith.constant 0 : i32
      %6 = arith.cmpi eq, %arg1, %c0_i32_2 : i32
      %7 = arith.extui %6 : i1 to i32
      %c0_i32_3 = arith.constant 0 : i32
      %8 = arith.cmpi ne, %7, %c0_i32_3 : i32
      scf.if %8 {
        %c0_15 = arith.constant 0 : index
        %c0_16 = arith.constant 0 : index
        %39 = vector.load %arg6[%c0_15, %c0_16] : memref<1x128xf32, #tpu.memory_space<vmem>>, vector<1x128xf32>
        %cst_17 = arith.constant 1.250000e-01 : f32
        %40 = vector.broadcast %cst_17 : f32 to vector<1x128xf32>
        %41 = arith.mulf %39, %40 : vector<1x128xf32>
        %c0_18 = arith.constant 0 : index
        %c0_19 = arith.constant 0 : index
        %42 = vector.load %arg7[%c0_18, %c0_19] : memref<1x128xf32, #tpu.memory_space<vmem>>, vector<1x128xf32>
        %cst_20 = arith.constant 1.250000e-01 : f32
        %43 = vector.broadcast %cst_20 : f32 to vector<1x128xf32>
        %44 = arith.mulf %42, %43 : vector<1x128xf32>
        %45 = arith.mulf %41, %41 : vector<1x128xf32>
        %46 = arith.subf %44, %45 : vector<1x128xf32>
        %cst_21 = arith.constant 0.000000e+00 : f32
        %47 = vector.broadcast %cst_21 : f32 to vector<1x128xf32>
        %48 = arith.maximumf %46, %47 : vector<1x128xf32>
        %c0_22 = arith.constant 0 : index
        %c0_23 = arith.constant 0 : index
        %49 = vector.load %arg4[%c0_22, %c0_23] : memref<2x128xf32, #tpu.memory_space<vmem>>, vector<1x128xf32>
        %cst_24 = arith.constant 9.99999974E-6 : f32
        %50 = vector.broadcast %cst_24 : f32 to vector<1x128xf32>
        %51 = arith.addf %48, %50 : vector<1x128xf32>
        %52 = math.rsqrt %51 : vector<1x128xf32>
        %53 = arith.mulf %49, %52 : vector<1x128xf32>
        %c0_25 = arith.constant 0 : index
        %c0_26 = arith.constant 0 : index
        %54 = vector.load %arg6[%c0_25, %c0_26] : memref<1x128xf32, #tpu.memory_space<vmem>>, vector<1x128xf32>
        tpu.vector_store %arg6[%c0_25, %c0_26], %53 {strides = array<i32>} : memref<1x128xf32, #tpu.memory_space<vmem>>, vector<1x128xf32>,
        %c1 = arith.constant 1 : index
        %c0_27 = arith.constant 0 : index
        %55 = vector.load %arg4[%c1, %c0_27] : memref<2x128xf32, #tpu.memory_space<vmem>>, vector<1x128xf32>
        %56 = arith.mulf %41, %53 : vector<1x128xf32>
        %57 = arith.subf %55, %56 : vector<1x128xf32>
        %c0_28 = arith.constant 0 : index
        %c0_29 = arith.constant 0 : index
        %58 = vector.load %arg7[%c0_28, %c0_29] : memref<1x128xf32, #tpu.memory_space<vmem>>, vector<1x128xf32>
        tpu.vector_store %arg7[%c0_28, %c0_29], %57 {strides = array<i32>} : memref<1x128xf32, #tpu.memory_space<vmem>>, vector<1x128xf32>,
      } else {
      }
      %9 = arith.index_cast %arg1 : i32 to index
      %c0 = arith.constant 0 : index
      %c0_4 = arith.constant 0 : index
      %10 = vector.load %arg8[%9, %c0, %c0_4] : memref<1x8x128xf32, #tpu.memory_space<vmem>>, vector<1x8x128xf32>
      %11 = vector.shape_cast %10 : vector<1x8x128xf32> to vector<8x128xf32>
      %c0_5 = arith.constant 0 : index
      %c0_6 = arith.constant 0 : index
      %12 = vector.load %arg6[%c0_5, %c0_6] : memref<1x128xf32, #tpu.memory_space<vmem>>, vector<1x128xf32>
      %13 = vector.broadcast %12 : vector<1x128xf32> to vector<8x128xf32>
      %14 = arith.mulf %11, %13 : vector<8x128xf32>
      %c0_7 = arith.constant 0 : index
      %c0_8 = arith.constant 0 : index
      %15 = vector.load %arg7[%c0_7, %c0_8] : memref<1x128xf32, #tpu.memory_space<vmem>>, vector<1x128xf32>
      %16 = vector.broadcast %15 : vector<1x128xf32> to vector<8x128xf32>
      %17 = arith.addf %14, %16 : vector<8x128xf32>
      %cst = arith.constant 5.000000e-01 : f32
      %18 = vector.broadcast %cst : f32 to vector<8x128xf32>
      %19 = arith.mulf %18, %17 : vector<8x128xf32>
      %20 = math.tanh %19 : vector<8x128xf32>
      %cst_9 = arith.constant 1.000000e+00 : f32
      %21 = vector.broadcast %cst_9 : f32 to vector<8x128xf32>
      %22 = arith.addf %20, %21 : vector<8x128xf32>
      %cst_10 = arith.constant 5.000000e-01 : f32
      %23 = vector.broadcast %cst_10 : f32 to vector<8x128xf32>
      %24 = arith.mulf %23, %22 : vector<8x128xf32>
      %25 = tpu.iota {dimensions = array<i32: 1>} : vector<1x128xi32>
      %c4_i32 = arith.constant 4 : i32
      %26 = vector.broadcast %c4_i32 : i32 to vector<1x128xi32>
      %27 = arith.cmpi slt, %25, %26 : vector<1x128xi32>
      %28 = math.exp %24 : vector<8x128xf32>
      %cst_11 = arith.constant 0.000000e+00 : f32
      %29 = vector.shape_cast %27 : vector<1x128xi1> to vector<1x128xi1>
      %30 = vector.broadcast %29 : vector<1x128xi1> to vector<8x128xi1>
      %31 = vector.broadcast %cst_11 : f32 to vector<8x128xf32>
      %32 = arith.select %30, %28, %31 : vector<8x128xi1>, vector<8x128xf32>
      %cst_12 = arith.constant dense<0.000000e+00> : vector<8xf32>
      %33 = vector.multi_reduction <add>, %32, %cst_12 [1] : vector<8x128xf32> to vector<8xf32>
      %34 = vector.shape_cast %33 : vector<8xf32> to vector<8x1xf32>
      %35 = tpu.reciprocal %34 : vector<8x1xf32> -> vector<8x1xf32>
      %36 = vector.broadcast %35 : vector<8x1xf32> to vector<8x128xf32>
      %37 = arith.mulf %32, %36 : vector<8x128xf32>
      %c0_13 = arith.constant 0 : index
      %c0_14 = arith.constant 0 : index
      %38 = vector.load %arg5[%c0_13, %c0_14] : memref<8x128xf32, #tpu.memory_space<vmem>>, vector<8x128xf32>
      tpu.vector_store %arg5[%c0_13, %c0_14], %37 {strides = array<i32>} : memref<8x128xf32, #tpu.memory_space<vmem>>, vector<8x128xf32>,
    } else {
    }
    return
  }
  func.func @transform_0(%arg0: i32, %arg1: i32) -> (i32, i32) {
    %c1_i32 = arith.constant 1 : i32
    %0 = arith.subi %c1_i32, %arg0 : i32
    %1 = arith.muli %arg1, %0 : i32
    %c0_i32 = arith.constant 0 : i32
    %2 = arith.muli %arg0, %c0_i32 : i32
    %3 = arith.addi %1, %2 : i32
    %c0_i32_0 = arith.constant 0 : i32
    %c0_i32_1 = arith.constant 0 : i32
    return %3, %c0_i32_0 : i32, i32
  }
  func.func @transform_1(%arg0: i32, %arg1: i32) -> (i32, i32) {
    %c0_i32 = arith.constant 0 : i32
    %c0_i32_0 = arith.constant 0 : i32
    %c0_i32_1 = arith.constant 0 : i32
    return %c0_i32, %c0_i32_0 : i32, i32
  }
  func.func @transform_2(%arg0: i32, %arg1: i32) -> (i32, i32) {
    %c0_i32 = arith.constant 0 : i32
    %c0_i32_0 = arith.constant 0 : i32
    %c0_i32_1 = arith.constant 0 : i32
    return %c0_i32, %c0_i32_0 : i32, i32
  }
  func.func @transform_3(%arg0: i32, %arg1: i32) -> (i32, i32) {
    %0 = arith.muli %arg1, %arg0 : i32
    %c0_i32 = arith.constant 0 : i32
    %c0_i32_0 = arith.constant 0 : i32
    return %0, %c0_i32 : i32, i32
  }
}

</mosaic_0001>

<llo_original>
// kernel: tpu_custom_call.1
$region0: #{tpu_custom_call.1}
  #allocation0 [shape = 'u32[]', space=smem, size = 0x4, offset = 0x4, fixed_abs, tag = 'smem constant byte address 0x4 - core index']
  #allocation1 [shape = 'u32[144,128]{1,0:T(1,128)}', space=vmem, size = 0x12000, scoped, tag = 'internal scratch']
  #allocation2 [shape = 'f32[1,128]{1,0:T(1,128)}', space=vmem, size = 0x200, scoped, tag = 'scratch operand']
  #allocation3 [shape = 'f32[1,128]{1,0:T(1,128)}', space=vmem, size = 0x200, scoped, tag = 'scratch operand']
  #allocation4 [shape = 'f32[1,8,128]{2,1,0:T(8,128)}', space=vmem, size = 0x1000, scoped, tag = 'scratch operand']
  %s0 = inlined_call_operand.hbm [shape: f32[8,32], index: 0, kind: input, shape index: {}]
  %s1 = inlined_call_operand.hbm [shape: f32[32,128], index: 1, kind: input, shape index: {}]
  %s2 = inlined_call_operand.vmem [shape: f32[2,128], index: 2, kind: input, shape index: {}]
  %s3 = inlined_call_operand.hbm [shape: f32[8,128], index: 3, kind: output, shape index: {}]
  %s4 = sld [smem:[#allocation0]]
  $region69: #{tpu_custom_call.1} parent=0
    _
  %s6 = ssub.s32 1, %s4
  %s7 = scalar_select 0, %s6, %s4
  $region1: #{tpu_custom_call.1} parent=0
    #allocation5 [shape = 'u8[8192]{0}', space=vmem, size = 0x2000, scoped, tag = 'input window, operand 0']
    #allocation6 [shape = 's32[2]{0}', space=sflag, size = 0x8, scoped, tag = 'scoped memory for tpu_custom_call.1']
    #allocation7 [shape = 's32[2]{0}', space=sflag, size = 0x8, scoped, tag = 'scoped memory for tpu_custom_call.1']
    #allocation8 [shape = 'u8[16384]{0}', space=vmem, size = 0x4000, scoped, tag = 'input window, operand 1, single buffered']
    #allocation9 [shape = 's32[1]{0}', space=sflag, size = 0x4, scoped, tag = 'scoped memory for tpu_custom_call.1']
    #allocation10 [shape = 'u8[8192]{0}', space=vmem, size = 0x2000, scoped, tag = 'output window, operand 0']
    %8 = vsyncpa [#allocation6], 0
    %s9 = scalar_lea.sflag [#allocation6], 1
    %10 = vsyncpa %s9, 0
    %11 = vsyncpa [#allocation9], 0
    %12 = vsyncpa [#allocation7], 0
    %s13 = scalar_lea.sflag [#allocation7], 1
    %14 = vsyncpa %s13, 0
    loop: start=0, step=1, limit=4
    $region2: #{tpu_custom_call.1} parent=1 // loop_pre_header
      _
    $region3: #{tpu_custom_call.1} parent=1 // loop_header
      %s16 = sphi 0, %s20
      %p17 = scmp.ge.s32.totalorder %s16, 4
      %s23 = sphi 0, %s35
      %s24 = sphi 0, %s31
      %s25 = sphi 0, %s23
      %s26 = sphi 0, %s24
      %s27 = sphi 0, %s25
      %s28 = sphi 0, %s26
      %s42 = sphi 0, %s44
      %s45 = sphi 0, %s42
      %s46 = sphi 0, %s45
      %s62 = sphi 0, %s46
      %s66 = sphi 0, %s66
      %s68 = sphi 0, %s66
      %s69 = sphi 0, %s68
      %s83 = sphi 0, %s69
      %s87 = sphi 0, %s87
      %s89 = sphi 0, %s87
      %s90 = sphi 0, %s89
      %s104 = sphi 0, %s90
      %s112 = sphi 0, %s114
      %s115 = sphi 0, %s112
      %s116 = sphi 0, %s115
      %s132 = sphi 0, %s116
    $region4: #{tpu_custom_call.1} parent=1 // loop_header_branch
      %19 = sbr.rel (%p17) target = $region8
    $region5: #{tpu_custom_call.1} parent=1 // loop_body
      %s21 = ssub.s32 %s16, 1
      %s22 = ssub.s32 %s16, 2
      %s29 = sadd.s32 1, %s24
      %p30 = scmp.ge.s32.totalorder %s29, 1
      %s31 = scalar_select %p30, 0, %s29
      %s32 = sadd.s32 1, %s23
      %s33 = scalar_select %p30, %s32, %s23
      %p34 = scmp.ge.s32.totalorder %s33, 2
      %s35 = scalar_select %p34, 0, %s33
      %s36 = ssub.s32 1, %s23
      %s37 = smul.u32 %s24, %s36
      %s38 = ssub.s32 1, %s35
      %s39 = smul.u32 %s31, %s38
      %s40 = ssub.s32 %s37, %s39
      %p41 = scmp.eq.s32.totalorder %s40, 0
      %s43 = sadd.s32 %s42, 1
      %s44 = scalar_select %p41, %s42, %s43
      %p47 = pneg %p41
      %p48 = scmp.eq.s32.totalorder %s16, 1
      %p49 = por %p47, %p48
      %p50 = scmp.ne.s32.totalorder %s42, %s45
      %p51 = scmp.eq.s32.totalorder %s16, 0
      %p52 = por %p50, %p51
      %p53 = scmp.ne.s32.totalorder %s42, %s45
      %p54 = scmp.eq.s32.totalorder %s21, 1
      %p55 = por %p53, %p54
      %p56 = scmp.ne.s32.totalorder %s45, %s46
      %p57 = scmp.eq.s32.totalorder %s21, 0
      %p58 = por %p56, %p57
      %p59 = scmp.ne.s32.totalorder %s45, %s46
      %p60 = scmp.eq.s32.totalorder %s22, 1
      %p61 = por %p59, %p60
      %p63 = scmp.ne.s32.totalorder %s46, %s62
      %p64 = scmp.eq.s32.totalorder %s22, 0
      %p65 = por %p63, %p64
      %s67 = sadd.s32 %s66, 1
      %p70 = scmp.eq.s32.totalorder %s16, 1
      %p71 = scmp.ne.s32.totalorder %s66, %s68
      %p72 = scmp.eq.s32.totalorder %s16, 0
      %p73 = por %p71, %p72
      %p74 = scmp.ne.s32.totalorder %s66, %s68
      %p75 = scmp.eq.s32.totalorder %s21, 1
      %p76 = por %p74, %p75
      %p77 = scmp.ne.s32.totalorder %s68, %s69
      %p78 = scmp.eq.s32.totalorder %s21, 0
      %p79 = por %p77, %p78
      %p80 = scmp.ne.s32.totalorder %s68, %s69
      %p81 = scmp.eq.s32.totalorder %s22, 1
      %p82 = por %p80, %p81
      %p84 = scmp.ne.s32.totalorder %s69, %s83
      %p85 = scmp.eq.s32.totalorder %s22, 0
      %p86 = por %p84, %p85
      %s88 = sadd.s32 %s87, 1
      %p91 = scmp.eq.s32.totalorder %s16, 1
      %p92 = scmp.ne.s32.totalorder %s87, %s89
      %p93 = scmp.eq.s32.totalorder %s16, 0
      %p94 = por %p92, %p93
      %p95 = scmp.ne.s32.totalorder %s87, %s89
      %p96 = scmp.eq.s32.totalorder %s21, 1
      %p97 = por %p95, %p96
      %p98 = scmp.ne.s32.totalorder %s89, %s90
      %p99 = scmp.eq.s32.totalorder %s21, 0
      %p100 = por %p98, %p99
      %p101 = scmp.ne.s32.totalorder %s89, %s90
      %p102 = scmp.eq.s32.totalorder %s22, 1
      %p103 = por %p101, %p102
      %p105 = scmp.ne.s32.totalorder %s90, %s104
      %p106 = scmp.eq.s32.totalorder %s22, 0
      %p107 = por %p105, %p106
      %s108 = smul.u32 %s24, %s23
      %s109 = smul.u32 %s31, %s35
      %s110 = ssub.s32 %s108, %s109
      %p111 = scmp.eq.s32.totalorder %s110, 0
      %s113 = sadd.s32 %s112, 1
      %s114 = scalar_select %p111, %s112, %s113
      %p117 = pneg %p111
      %p118 = scmp.eq.s32.totalorder %s16, 1
      %p119 = por %p117, %p118
      %p120 = scmp.ne.s32.totalorder %s112, %s115
      %p121 = scmp.eq.s32.totalorder %s16, 0
      %p122 = por %p120, %p121
      %p123 = scmp.ne.s32.totalorder %s112, %s115
      %p124 = scmp.eq.s32.totalorder %s21, 1
      %p125 = por %p123, %p124
      %p126 = scmp.ne.s32.totalorder %s115, %s116
      %p127 = scmp.eq.s32.totalorder %s21, 0
      %p128 = por %p126, %p127
      %p129 = scmp.ne.s32.totalorder %s115, %s116
      %p130 = scmp.eq.s32.totalorder %s22, 1
      %p131 = por %p129, %p130
      %p133 = scmp.ne.s32.totalorder %s116, %s132
      %p134 = scmp.eq.s32.totalorder %s22, 0
      %p135 = por %p133, %p134
      %p136 = scmp.le.s32.totalorder 1, %s16
      %p137 = scmp.lt.s32.totalorder %s16, 3
      %p138 = pnand %p136, %p137
      %p139 = pneg %p138
      // Predicated region
      $region9: #{tpu_custom_call.1} parent=5 // pred_check
        _
      $region10: #{tpu_custom_call.1} parent=5 // pred_check_branch
        %141 = sbr.rel (%p138) target = $region12
      $region11: #{tpu_custom_call.1} parent=5 // pred_region
        %s142 = ssub.s32 %s16, 1
        // Predicated region
        $region13: #{tpu_custom_call.1} parent=11 // pred_check
          %p143 = pneg %p79
        $region14: #{tpu_custom_call.1} parent=11 // pred_check_branch
          %145 = sbr.rel (%p143) target = $region16
        $region15: #{tpu_custom_call.1} parent=11 // pred_region
          %s147 = ssub.s32 512, 512
          %148 = vsyncadd [#allocation9], %s147
          %s149 = sshll.u32 [#allocation8], 4
          %s150 = int_to_ptr.vmem [resolvable:$true] %s149
          %155 = dma.hbm_to_vmem [thread:$0]  %s1, 512, %s150, [#allocation9], 128, 128, 8
        $region16: #{tpu_custom_call.1} parent=11 // pred_fallthru
          _
        // Predicated region
        $region17: #{tpu_custom_call.1} parent=11 // pred_check
          %p156 = pneg %p100
        $region18: #{tpu_custom_call.1} parent=11 // pred_check_branch
          %158 = sbr.rel (%p156) target = $region20
        $region19: #{tpu_custom_call.1} parent=11 // pred_region
          _
        $region20: #{tpu_custom_call.1} parent=11 // pred_fallthru
          _
      $region12: #{tpu_custom_call.1} parent=5 // pred_fallthru
        _
      %p159 = scmp.lt.s32.totalorder %s16, 2
      // Predicated region
      $region21: #{tpu_custom_call.1} parent=5 // pred_check
        %p160 = pneg %p159
      $region22: #{tpu_custom_call.1} parent=5 // pred_check_branch
        %162 = sbr.rel (%p160) target = $region24
      $region23: #{tpu_custom_call.1} parent=5 // pred_region
        // Predicated region
        $region25: #{tpu_custom_call.1} parent=23 // pred_check
          %p163 = pneg %p52
        $region26: #{tpu_custom_call.1} parent=23 // pred_check_branch
          %165 = sbr.rel (%p163) target = $region28
        $region27: #{tpu_custom_call.1} parent=23 // pred_region
          %s166 = sand.u32 %s42, 1
          %s167 = scalar_lea.sflag [#allocation6], %s166
          %s168 = sand.u32 %s42, 1
          %s169 = smul.addr %s168, 8
          %s170 = scalar_lea.vmem [#allocation5], %s169
          %s171 = ssub.s32 1, %s23
          %s172 = smul.u32 %s24, %s171
          %s174 = ssub.s32 128, 128
          %175 = vsyncadd %s167, %s174
          %s176 = smul.addr %s172, 128
          %s177 = scalar_lea.hbm %s0, %s176
          %s179 = sshll.u32 %s170, 4
          %s180 = int_to_ptr.vmem [resolvable:$true] %s179
          %182 = dma.hbm_to_vmem [thread:$0]  %s177, 128, %s180, %s167
        $region28: #{tpu_custom_call.1} parent=23 // pred_fallthru
          _
      $region24: #{tpu_custom_call.1} parent=5 // pred_fallthru
        _
      %p183 = scmp.le.s32.totalorder 1, %s16
      %p184 = scmp.lt.s32.totalorder %s16, 3
      %p185 = pnand %p183, %p184
      %p186 = pneg %p185
      // Predicated region
      $region29: #{tpu_custom_call.1} parent=5 // pred_check
        _
      $region30: #{tpu_custom_call.1} parent=5 // pred_check_branch
        %188 = sbr.rel (%p185) target = $region32
      $region31: #{tpu_custom_call.1} parent=5 // pred_region
        %s189 = ssub.s32 %s16, 1
        %s190 = sand.u32 %s45, 1
        %s191 = scalar_lea.sflag [#allocation6], %s190
        %s192 = sand.u32 %s45, 1
        %s193 = smul.addr %s192, 8
        %s194 = scalar_lea.vmem [#allocation5], %s193
        // Predicated region
        $region33: #{tpu_custom_call.1} parent=31 // pred_check
          %p195 = pneg %p58
        $region34: #{tpu_custom_call.1} parent=31 // pred_check_branch
          %197 = sbr.rel (%p195) target = $region36
        $region35: #{tpu_custom_call.1} parent=31 // pred_region
          %198 = dma.done %s191, 128
        $region36: #{tpu_custom_call.1} parent=31 // pred_fallthru
          _
        // Predicated region
        $region37: #{tpu_custom_call.1} parent=31 // pred_check
          %p199 = pneg %p79
        $region38: #{tpu_custom_call.1} parent=31 // pred_check_branch
          %201 = sbr.rel (%p199) target = $region40
        $region39: #{tpu_custom_call.1} parent=31 // pred_region
          %202 = dma.done [#allocation9], 512
        $region40: #{tpu_custom_call.1} parent=31 // pred_fallthru
          _
        %s203 = sand.u32 %s45, 1
        %s204 = scalar_lea.sflag [#allocation6], %s203
        %s205 = sand.u32 %s45, 1
        %s206 = smul.addr %s205, 8
        %s207 = scalar_lea.vmem [#allocation5], %s206
        %p208 = pneg %p58
        %p209 = pneg %p55
        %p210 = pneg %p79
        %p211 = pneg %p76
        %p212 = pneg %p100
        %p213 = pneg %p97
        %p214 = pneg %p128
        %p215 = pneg %p125
        %s216 = sand.u32 %s115, 1
        %s217 = scalar_lea.sflag [#allocation7], %s216
        %s218 = sand.u32 %s115, 1
        %s219 = smul.addr %s218, 8
        %s220 = scalar_lea.vmem [#allocation10], %s219
        %s221 = ssub.s32 1, %s25
        %s222 = smul.u32 %s26, %s221
        %s223 = smul.u32 %s26, %s25
        %p224 = scmp.eq.s32.totalorder %s25, 0
        // Predicated region
        $region41: #{tpu_custom_call.1} parent=31 // pred_check
          %p225 = pneg %p224
        $region42: #{tpu_custom_call.1} parent=31 // pred_check_branch
          %227 = sbr.rel (%p225) target = $region44
        $region43: #{tpu_custom_call.1} parent=31 // pred_region
          %p228 = scmp.eq.s32.totalorder %s26, 0
          // Predicated region
          $region45: #{tpu_custom_call.1} parent=43 // pred_check
            %p229 = pneg %p228
          $region46: #{tpu_custom_call.1} parent=43 // pred_check_branch
            %231 = sbr.rel (%p229) target = $region48
          $region47: #{tpu_custom_call.1} parent=43 // pred_region
            %232 = vst [vmem:[#allocation2] sm:$0x1] 0.0
            %233 = vst [vmem:[#allocation3] sm:$0x1] 0.0
          $region48: #{tpu_custom_call.1} parent=43 // pred_fallthru
            _
          %v234 = vld [vmem:[%s194] sm:$0xff]
          %v235 = vld [vmem:[#allocation8] sm:$0xff]
          %v236 = vld [vmem:[#allocation8 + $0x8] sm:$0xff]
          %v237 = vld [vmem:[#allocation8 + $0x10] sm:$0xff]
          %v238 = vld [vmem:[#allocation8 + $0x18] sm:$0xff]
          %vm239 = vcmask 261120
          %v241 = vsel %vm239, %v234, 0
          %243 = vmatprep.subr.mxu0 0.0
          %244 = vmatpush1.msra.mxu0 %v235
          %245 = vmatprep.subr.mxu0 0.0
          %246 = vmatpush1.msra.mxu0 %v236
          %247 = vmatprep.subr.mxu0 0.0
          %248 = vmatpush1.msra.mxu0 %v237
          %249 = vmatprep.subr.mxu0 0.0
          %250 = vmatpush1.msra.mxu0 %v238
          %251 = vmatprep.subr.mxu0 0.0
          %252 = vmatpush1.msra.mxu0 0.0
          %253 = vmatprep.subr.mxu0 0.0
          %254 = vmatpush1.msra.mxu0 0.0
          %255 = vmatprep.subr.mxu0 0.0
          %256 = vmatpush1.msra.mxu0 0.0
          %257 = vmatprep.subr.mxu0 0.0
          %258 = vmatpush1.msra.mxu0 0.0
          %259 = vmatprep.subr.mxu0 0.0
          %260 = vmatpush1.msra.mxu0 0.0
          %261 = vmatprep.subr.mxu0 0.0
          %262 = vmatpush1.msra.mxu0 0.0
          %263 = vmatprep.subr.mxu0 0.0
          %264 = vmatpush1.msra.mxu0 0.0
          %265 = vmatprep.subr.mxu0 0.0
          %266 = vmatpush1.msra.mxu0 0.0
          %267 = vmatprep.subr.mxu0 0.0
          %268 = vmatpush1.msra.mxu0 0.0
          %269 = vmatprep.subr.mxu0 0.0
          %270 = vmatpush1.msra.mxu0 0.0
          %271 = vmatprep.subr.mxu0 0.0
          %272 = vmatpush1.msra.mxu0 0.0
          %273 = vmatprep.subr.mxu0 0.0
          %274 = vmatpush1.msra.mxu0 0.0
          %275 = vmatprep.subr.mxu0 0.0
          %276 = vmatpush1.msra.mxu0 0.0
          %277 = vmatprep.subr.mxu0 0.0
          %278 = vmatpush1.msra.mxu0 0.0
          %279 = vmatprep.subr.mxu0 0.0
          %280 = vmatpush1.msra.mxu0 0.0
          %281 = vmatprep.subr.mxu0 0.0
          %282 = vmatpush1.msra.mxu0 0.0
          %283 = vmatprep.subr.mxu0 0.0
          %284 = vmatpush1.msra.mxu0 0.0
          %285 = vmatprep.subr.mxu0 0.0
          %286 = vmatpush1.msra.mxu0 0.0
          %287 = vmatprep.subr.mxu0 0.0
          %288 = vmatpush1.msra.mxu0 0.0
          %289 = vmatprep.subr.mxu0 0.0
          %290 = vmatpush1.msra.mxu0 0.0
          %291 = vmatprep.subr.mxu0 0.0
          %292 = vmatpush1.msra.mxu0 0.0
          %293 = vmatprep.subr.mxu0 0.0
          %294 = vmatpush1.msra.mxu0 0.0
          %295 = vmatprep.subr.mxu0 0.0
          %296 = vmatpush1.msra.mxu0 0.0
          %297 = vmatprep.subr.mxu0 0.0
          %298 = vmatpush1.msra.mxu0 0.0
          %299 = vmatprep.subr.mxu0 0.0
          %300 = vmatpush1.msra.mxu0 0.0
          %301 = vmatprep.subr.mxu0 0.0
          %302 = vmatpush1.msra.mxu0 0.0
          %303 = vmatprep.subr.mxu0 0.0
          %304 = vmatpush1.msra.mxu0 0.0
          %305 = vmatprep.subr.mxu0 0.0
          %306 = vmatpush1.msra.mxu0 0.0
          %307 = vmatprep.mubr.f32.mxu0 0.0
          %308 = vmatmul.mubr.f32.gmra.mrb[0].mxu0 %v241
          %v309 = vpop.f32.mrb[0].mxu0
          %v310 = vadd.f32 0.0, %v309
          %v311 = vpop.f32.mrb[0].mxu0
          %312 = vdwg.mxu0
          %s313 = smul.u32 %s26, 8
          %s314 = scalar_lea.vmem [#allocation4], %s313
          %315 = vst [vmem:[%s314] sm:$0xff] %v310
          %v316 = vld [vmem:[#allocation2] sm:$0x1]
          %v317 = vrot.slane %v310, 4
          %v318 = vadd.f32 %v310, %v317
          %v319 = vrot.slane %v318, 2
          %v320 = vadd.f32 %v318, %v319
          %v321 = vrot.slane %v320, 1
          %v322 = vadd.f32 %v320, %v321
          %v323 = vadd.f32 %v316, %v322
          %324 = vst [vmem:[#allocation2] sm:$0x1] %v323
          %v325 = vld [vmem:[#allocation3] sm:$0x1]
          %v326 = vmul.f32 %v310, %v310
          %v327 = vrot.slane %v326, 4
          %v328 = vadd.f32 %v326, %v327
          %v329 = vrot.slane %v328, 2
          %v330 = vadd.f32 %v328, %v329
          %v331 = vrot.slane %v330, 1
          %v332 = vadd.f32 %v330, %v331
          %v333 = vadd.f32 %v325, %v332
          %334 = vst [vmem:[#allocation3] sm:$0x1] %v333
        $region44: #{tpu_custom_call.1} parent=31 // pred_fallthru
          _
        %p335 = scmp.eq.s32.totalorder %s25, 1
        // Predicated region
        $region49: #{tpu_custom_call.1} parent=31 // pred_check
          %p336 = pneg %p335
        $region50: #{tpu_custom_call.1} parent=31 // pred_check_branch
          %338 = sbr.rel (%p336) target = $region52
        $region51: #{tpu_custom_call.1} parent=31 // pred_region
          %p339 = scmp.eq.s32.totalorder %s26, 0
          // Predicated region
          $region53: #{tpu_custom_call.1} parent=51 // pred_check
            %p340 = pneg %p339
          $region54: #{tpu_custom_call.1} parent=51 // pred_check_branch
            %342 = sbr.rel (%p340) target = $region56
          $region55: #{tpu_custom_call.1} parent=51 // pred_region
            %v343 = vld [vmem:[#allocation2] sm:$0x1]
            %v344 = vmul.f32 %v343, 0.125
            %v345 = vld [vmem:[#allocation3] sm:$0x1]
            %v346 = vmul.f32 %v345, 0.125
            %v347 = vmul.f32 %v344, %v344
            %v348 = vsub.f32 %v346, %v347
            %v349 = vmax.f32 %v348, 0.0
            %v350 = vld [vmem:[%s2] sm:$0x1]
            %v351 = vadd.f32 %v349, 1e-05
            %v352 = vrsqrt.pop %v351
            %v353 = vmul.f32 %v350, %v352
            %354 = vst [vmem:[#allocation2] sm:$0x1] %v353
            %v355 = vld [vmem:[%s2 + $0x1] sm:$0x1]
            %v356 = vmul.f32 %v344, %v353
            %v357 = vsub.f32 %v355, %v356
            %358 = vst [vmem:[#allocation3] sm:$0x1] %v357
          $region56: #{tpu_custom_call.1} parent=51 // pred_fallthru
            _
          %s359 = smul.u32 %s26, 8
          %s360 = scalar_lea.vmem [#allocation4], %s359
          %v361 = vld [vmem:[%s360] sm:$0xff]
          %v362 = vld [vmem:[#allocation2] sm:$0x1]
          %v364 = vlaneseq
          %v365 = vshrl.u32 %v364, 7
          %v366 = vsub.s32 0, %v365
          %v367 = vrot.slane %v362, %v366
          %v369 = vmul.f32 %v361, %v367
          %v370 = vld [vmem:[#allocation3] sm:$0x1]
          %v372 = vlaneseq
          %v373 = vshrl.u32 %v372, 7
          %v374 = vsub.s32 0, %v373
          %v375 = vrot.slane %v370, %v374
          %v377 = vadd.f32 %v369, %v375
          %v378 = vmul.f32 %v377, 0.5
          %v379 = vtanh.pop %v378
          %v380 = vadd.f32 %v379, 1.0
          %v381 = vmul.f32 %v380, 0.5
          %v382 = vlaneseq
          %v383 = vand.u32 %v382, 127
          %vm384 = vcmp.lt.s32.totalorder %v383, 4
          %v385 = vmul.f32 %v381, 1.442695
          %v386 = vpow.pop %v385
          %v387 = vsel %vm384, 1, 0
          %vm388 = vcmp.eq.s32.totalorder %v387, 1
          %v389 = vsel %vm388, %v386, 0.0
          %390 = vadd.xlane.f32.xlu0 %v389
          %v391 = vpop.xlane.xlu0 %390
          %v392 = vrcp.pop %v391
          %v393 = vmul.f32 %v389, %v392
          %394 = vst [vmem:[%s220] sm:$0xff] %v393
        $region52: #{tpu_custom_call.1} parent=31 // pred_fallthru
          _
        %s395 = sand.u32 %s115, 1
        %s396 = scalar_lea.sflag [#allocation7], %s395
        %s397 = sand.u32 %s115, 1
        %s398 = smul.addr %s397, 8
        %s399 = scalar_lea.vmem [#allocation10], %s398
        // Predicated region
        $region57: #{tpu_custom_call.1} parent=31 // pred_check
          %p400 = pneg %p125
        $region58: #{tpu_custom_call.1} parent=31 // pred_check_branch
          %402 = sbr.rel (%p400) target = $region60
        $region59: #{tpu_custom_call.1} parent=31 // pred_region
          %s403 = smul.u32 %s26, %s25
          %s405 = ssub.s32 128, 128
          %406 = vsyncadd %s396, %s405
          %s407 = smul.addr %s403, 128
          %s408 = scalar_lea.hbm %s3, %s407
          %s410 = sshll.u32 %s399, 4
          %s411 = int_to_ptr.vmem [resolvable:$true] %s410
          %413 = dma.vmem_to_hbm [thread:$0]  %s411, 128, %s408, %s396
        $region60: #{tpu_custom_call.1} parent=31 // pred_fallthru
          _
      $region32: #{tpu_custom_call.1} parent=5 // pred_fallthru
        _
      %p414 = scmp.le.s32.totalorder 2, %s16
      // Predicated region
      $region61: #{tpu_custom_call.1} parent=5 // pred_check
        %p415 = pneg %p414
      $region62: #{tpu_custom_call.1} parent=5 // pred_check_branch
        %417 = sbr.rel (%p415) target = $region64
      $region63: #{tpu_custom_call.1} parent=5 // pred_region
        %s418 = ssub.s32 %s16, 2
        // Predicated region
        $region65: #{tpu_custom_call.1} parent=63 // pred_check
          %p419 = pneg %p131
        $region66: #{tpu_custom_call.1} parent=63 // pred_check_branch
          %421 = sbr.rel (%p419) target = $region68
        $region67: #{tpu_custom_call.1} parent=63 // pred_region
          %s422 = sand.u32 %s116, 1
          %s423 = scalar_lea.sflag [#allocation7], %s422
          %s424 = sand.u32 %s116, 1
          %s425 = smul.addr %s424, 8
          %s426 = scalar_lea.vmem [#allocation10], %s425
          %427 = dma.done %s423, 128
        $region68: #{tpu_custom_call.1} parent=63 // pred_fallthru
          _
      $region64: #{tpu_custom_call.1} parent=5 // pred_fallthru
        _
    $region6: #{tpu_custom_call.1} parent=1 // loop_footer
      %s20 = sadd.s32 1, %s16
    $region7: #{tpu_custom_call.1} parent=1 // loop_footer_branch
      %15 = sbr.rel target = $region3
    $region8: #{tpu_custom_call.1} parent=1 // loop_exit
      _
    %428 = vsyncpa [#allocation6], 1
    %s429 = scalar_lea.sflag [#allocation6], 1
    %430 = vsyncpa %s429, 1
    %431 = vsyncpa [#allocation9], 1
    %432 = vsyncpa [#allocation7], 1
    %s433 = scalar_lea.sflag [#allocation7], 1
    %434 = vsyncpa %s433, 1

</llo_original>
